<compile_context>
chip_gen: v6e
topology: v6e:2x2x1
jax: 0.10.0
libtpu: 0.0.40
codegen_flags: <defaults>
</compile_context>

<pallas_src>
import jax
import jax.numpy as jnp
import numpy as np
from jax.experimental import pallas as pl
from jax.experimental.pallas import tpu as pltpu

_REF_SENTINEL = 1.0e4    # masked / padded ref points
_SRC_SENTINEL = -3.0e4   # masked / padded src points (different magnitude, so a
                         # masked-vs-masked pair can never fall inside the radius)


def _round_up(x, m):
    return ((x + m - 1) // m) * m


def _fine_matching_kernel(tf_ref,    # SMEM (12,) f32 : rows of [R | t] (3x4)
                          ref_ref,   # (Bt, N+1, 5)  [2x, 2y, 2z, |x|^2 - r^2, mask]
                          src_ref,   # (Bt, 4, M+1)  [x; y; z; mask] coord-major
                          sc_ref,    # (Bt, N+1, M+1) matching scores (full)
                          out_ref):  # (1, 8, 128)  [0,0,0]=sum_sel, [0,0,1]=count
    f32 = jnp.float32
    # ---- transform scalars from SMEM ----
    r00 = tf_ref[0]; r01 = tf_ref[1]; r02 = tf_ref[2];  t0 = tf_ref[3]
    r10 = tf_ref[4]; r11 = tf_ref[5]; r12 = tf_ref[6];  t1 = tf_ref[7]
    r20 = tf_ref[8]; r21 = tf_ref[9]; r22 = tf_ref[10]; t2 = tf_ref[11]

    # ---- apply_transform(src, T): per coordinate, (Bt,1,M+1)-sized work ----
    sx = src_ref[:, 0:1, :]
    sy = src_ref[:, 1:2, :]
    sz = src_ref[:, 2:3, :]
    src_m = src_ref[:, 3:4, :]
    tx = r00 * sx + r01 * sy + r02 * sz + t0     # (Bt, 1, M+1)
    ty = r10 * sx + r11 * sy + r12 * sz + t1
    tz = r20 * sx + r21 * sy + r22 * sz + t2
    y2 = tx * tx + ty * ty + tz * tz             # (Bt, 1, M+1)

    # ---- small per-row operands ----
    rx2 = ref_ref[:, :, 0:1]                     # 2*x   (Bt, N+1, 1)
    ry2 = ref_ref[:, :, 1:2]
    rz2 = ref_ref[:, :, 2:3]
    x2mr = ref_ref[:, :, 3:4]                    # |x|^2 - r^2
    ref_m = ref_ref[:, :, 4:5]

    # ---- full-tile path: dist < r^2  <=>  (|x|^2 - r^2) + |y|^2 < 2 x.y ----
    # TODO(synk): the 2*x.y term could go to the (idle) MXU via a batched K=3
    # einsum; skipped since tiny-K matmul setup/drain can dominate at the small
    # per-row sizes typical here (review caveat), and v5e is HBM-bound anyway.
    xy2 = rx2 * tx + ry2 * ty + rz2 * tz         # (Bt, N+1, M+1), 3 FMAs
    hit = (x2mr + y2) < xy2                      # broadcast add + compare
    gt_corr = hit.astype(f32)                    # select
    # Sentinel coordinates guarantee gt_corr == 0 on the slack row/col, on
    # masked rows/cols and on padded batch entries.

    row_sum = jnp.sum(gt_corr, axis=2, keepdims=True)   # (Bt, N+1, 1)
    col_sum = jnp.sum(gt_corr, axis=1, keepdims=True)   # (Bt, 1, M+1)
    slack_row = jnp.where(row_sum == 0.0, ref_m, 0.0)   # (Bt, N+1, 1)
    slack_col = jnp.where(col_sum == 0.0, src_m, 0.0)   # (Bt, 1, M+1)

    n1 = sc_ref.shape[1]
    m1 = sc_ref.shape[2]
    sum_sel = (jnp.sum(sc_ref[...] * gt_corr)                      # main region
               + jnp.sum(sc_ref[:, :, m1 - 1:m1] * slack_row)      # slack column
               + jnp.sum(sc_ref[:, n1 - 1:n1, :] * slack_col))     # slack row
    cnt = jnp.sum(row_sum) + jnp.sum(slack_row) + jnp.sum(slack_col)

    lane = jax.lax.broadcasted_iota(jnp.int32, (1, 8, 128), 2)
    sub = jax.lax.broadcasted_iota(jnp.int32, (1, 8, 128), 1)
    out_ref[...] = jnp.where((sub == 0) & (lane == 0), sum_sel,
                             jnp.where((sub == 0) & (lane == 1), cnt, 0.0))


def _vmem_limit_bytes():
    cap = 64 * 1024 * 1024                       # conservative: v7x physical VMEM
    try:
        info = pltpu.get_tpu_info()
        cap = int(getattr(info, "vmem_capacity_bytes", cap))
    except Exception:
        pass
    # ~70% of physical: ~45 MiB on v7x (64 MiB), ~90 MiB on v5e/v6e (128 MiB)
    return int(min(0.7 * cap, 100 * 1024 * 1024))


def fine_matching_loss(ref_pts, src_pts, ref_masks, src_masks, scores,
                       transform, positive_radius, *, block_b=64):
    """JAX/Pallas equivalent of FineMatchingLoss.forward.

    ref_pts: (B, N, 3), src_pts: (B, M, 3), ref_masks: (B, N) bool,
    src_masks: (B, M) bool, scores: (B, N+1, M+1), transform: (4, 4).
    """
    f32 = jnp.float32
    B, N, _ = ref_pts.shape
    M = src_pts.shape[1]
    N1, M1 = N + 1, M + 1
    r2 = float(positive_radius) ** 2

    # ---- choose the batch block Bt from the real VMEM budget ----
    vmem_limit = _vmem_limit_bytes()
    t_sc = _round_up(N1, 8) * _round_up(M1, 128) * 4      # main tile (VMEM layout)
    t_ref = _round_up(N1, 8) * 128 * 4                    # ref pack (lane-padded)
    t_src = 8 * _round_up(M1, 128) * 4                    # src pack (sublane-padded)
    # double-buffered inputs + ~6 live full-tile f32 temporaries per batch elem
    per_b = 2 * (t_sc + t_ref + t_src) + 6 * t_sc
    budget = max(0, vmem_limit - 6 * 1024 * 1024)         # headroom (out, scratch)
    bt_cap = max(1, budget // per_b)

    bt = int(max(1, min(block_b, bt_cap, B)))
    if B >= 2:                                  # keep >= 2 grid steps so both v7x
        bt = min(bt, -(-B // 2))                # TensorCores get work
    if bt > 1 and B % bt != 0:                  # prefer a divisor of B: no batch pad
        for d in range(bt, max(2, (bt + 1) // 2) - 1, -1):
            if B % d == 0:
                bt = d
                break
    Bp = _round_up(B, bt)
    nB = Bp // bt

    # ---- bake masks / batch padding into the coordinates (sentinels) ----
    refc = jnp.where(ref_masks[..., None], ref_pts.astype(f32), _REF_SENTINEL)
    srcc = jnp.where(src_masks[..., None], src_pts.astype(f32), _SRC_SENTINEL)
    # one extra sentinel row / column (aligned with the slack row/col of scores)
    refc = jnp.pad(refc, ((0, Bp - B), (0, 1), (0, 0)),
                   constant_values=_REF_SENTINEL)                    # (Bp, N1, 3)
    srcc = jnp.pad(srcc, ((0, Bp - B), (0, 1), (0, 0)),
                   constant_values=_SRC_SENTINEL)                    # (Bp, M1, 3)
    refm = jnp.pad(ref_masks.astype(f32), ((0, Bp - B), (0, 1)))     # (Bp, N1)
    srcm = jnp.pad(src_masks.astype(f32), ((0, Bp - B), (0, 1)))     # (Bp, M1)

    x2 = jnp.sum(refc * refc, axis=-1)                               # (Bp, N1)
    ref_pack = jnp.concatenate([2.0 * refc,
                                (x2 - r2)[..., None],
                                refm[..., None]], axis=-1)           # (Bp, N1, 5)
    src_pack = jnp.concatenate([jnp.transpose(srcc, (0, 2, 1)),
                                srcm[:, None, :]], axis=1)           # (Bp, 4, M1)

    sc = scores.astype(f32)
    if Bp > B:       # only the batch dim is ever padded, and only if no divisor fit
        sc = jnp.pad(sc, ((0, Bp - B), (0, 0), (0, 0)))

    tf_flat = transform.astype(f32)[:3, :4].reshape(-1)              # (12,) [R | t]

    partials = pl.pallas_call(
        _fine_matching_kernel,
        out_shape=jax.ShapeDtypeStruct((nB, 8, 128), f32),
        grid_spec=pltpu.PrefetchScalarGridSpec(
            num_scalar_prefetch=0,
            grid=(nB,),
            in_specs=[
                pl.BlockSpec(memory_space=pltpu.MemorySpace.SMEM),   # transform
                pl.BlockSpec((bt, N1, 5), lambda g: (g, 0, 0)),      # ref pack
                pl.BlockSpec((bt, 4, M1), lambda g: (g, 0, 0)),      # src pack
                pl.BlockSpec((bt, N1, M1), lambda g: (g, 0, 0)),     # scores (full)
            ],
            out_specs=pl.BlockSpec((1, 8, 128), lambda g: (g, 0, 0)),
        ),
        compiler_params=pltpu.CompilerParams(
            dimension_semantics=("parallel",),
            vmem_limit_bytes=vmem_limit),
    )(tf_flat, ref_pack, src_pack, sc)

    total = jnp.sum(partials[:, 0, 0])
    count = jnp.sum(partials[:, 0, 1])
    # loss = -matching_scores[labels].mean()  (NaN if no labels, same as torch)
    return -(total / count)


def reference_loss(ref_pts, src_pts, ref_masks, src_masks, scores,
                   transform, positive_radius):
    """Pure-JAX mirror of the PyTorch forward (for correctness check)."""
    R = transform[:3, :3]
    t = transform[:3, 3]
    src_t = jnp.einsum('bmc,dc->bmd', src_pts, R) + t[None, None, :]
    x2 = jnp.sum(ref_pts ** 2, axis=-1, keepdims=True)
    y2 = jnp.sum(src_t ** 2, axis=-1)[:, None, :]
    xy = jnp.einsum('bnc,bmc->bnm', ref_pts, src_t)
    dists = x2 - 2.0 * xy + y2
    gt_masks = jnp.logical_and(ref_masks[:, :, None], src_masks[:, None, :])
    gt_corr = jnp.logical_and(dists < positive_radius ** 2, gt_masks)
    slack_row = jnp.logical_and(gt_corr.sum(2) == 0, ref_masks)
    slack_col = jnp.logical_and(gt_corr.sum(1) == 0, src_masks)
    labels = jnp.zeros(scores.shape, dtype=bool)
    labels = labels.at[:, :-1, :-1].set(gt_corr)
    labels = labels.at[:, :-1, -1].set(slack_row)
    labels = labels.at[:, -1, :-1].set(slack_col)
    sel_sum = jnp.sum(jnp.where(labels, scores, 0.0))
    cnt = jnp.sum(labels)
    return -(sel_sum / cnt)


def _make_inputs(key, B, N, M):
    k1, k2, k3, k4, k5 = jax.random.split(key, 5)
    ref_pts = jax.random.uniform(k1, (B, N, 3), jnp.float32)
    src_pts = jax.random.uniform(k2, (B, M, 3), jnp.float32)
    ref_masks = jax.random.bernoulli(k3, 0.8, (B, N))
    src_masks = jax.random.bernoulli(k4, 0.8, (B, M))
    scores = jax.random.normal(k5, (B, N + 1, M + 1), jnp.float32)
    return ref_pts, src_pts, ref_masks, src_masks, scores


if __name__ == "__main__":
    key = jax.random.PRNGKey(0)
    theta = 0.3
    c, s = float(np.cos(theta)), float(np.sin(theta))
    transform = jnp.array([[c, -s, 0.0, 0.10],
                           [s,  c, 0.0, -0.05],
                           [0.0, 0.0, 1.0, 0.02],
                           [0.0, 0.0, 0.0, 1.0]], dtype=jnp.float32)
    positive_radius = 0.3   # cfg.fine_loss.positive_radius

    kA, kB = jax.random.split(key, 2)
    # Case 1: B divisible by the chosen Bt (no batch padding).
    # Case 2: B=5 (no divisor in range -> exercises the batch-padding path).
    for k, (B, N, M) in ((kA, (6, 10, 20)), (kB, (5, 12, 17))):
        args = _make_inputs(k, B, N, M)
        loss = fine_matching_loss(*args, transform, positive_radius)
        jax.block_until_ready(loss)
        ref = reference_loss(*args, transform, positive_radius)
        np.testing.assert_allclose(np.asarray(loss), np.asarray(ref),
                                   rtol=1e-4, atol=1e-5)
    print("KERNEL_OK")
</pallas_src>

<mosaic_0001>
module attributes {stable_mosaic.version = 11 : i64} {
  func.func @_fine_matching_kernel(%arg0: i32, %arg1: memref<12xf32, #tpu.memory_space<smem>>, %arg2: memref<3x11x5xf32, #tpu.memory_space<vmem>>, %arg3: memref<3x4x21xf32, #tpu.memory_space<vmem>>, %arg4: memref<3x11x21xf32, #tpu.memory_space<vmem>>, %arg5: memref<1x8x128xf32, #tpu.memory_space<vmem>>) attributes {dimension_semantics = [#tpu.dimension_semantics<parallel>], iteration_bounds = array<i64: 2>, scalar_prefetch = 0 : i64, scratch_operands = 0 : i64, tpu.core_type = #tpu.core_type<tc>, window_params = [{transform_indices = @transform_0, window_bounds = array<i64: 12>}, {transform_indices = @transform_1, window_bounds = array<i64: 3, 11, 5>}, {transform_indices = @transform_2, window_bounds = array<i64: 3, 4, 21>}, {transform_indices = @transform_3, window_bounds = array<i64: 3, 11, 21>}, {transform_indices = @transform_4, window_bounds = array<i64: 1, 8, 128>}]} {
    %c0 = arith.constant 0 : index
    %0 = memref.load %arg1[%c0] : memref<12xf32, #tpu.memory_space<smem>>
    %c1 = arith.constant 1 : index
    %1 = memref.load %arg1[%c1] : memref<12xf32, #tpu.memory_space<smem>>
    %c2 = arith.constant 2 : index
    %2 = memref.load %arg1[%c2] : memref<12xf32, #tpu.memory_space<smem>>
    %c3 = arith.constant 3 : index
    %3 = memref.load %arg1[%c3] : memref<12xf32, #tpu.memory_space<smem>>
    %c4 = arith.constant 4 : index
    %4 = memref.load %arg1[%c4] : memref<12xf32, #tpu.memory_space<smem>>
    %c5 = arith.constant 5 : index
    %5 = memref.load %arg1[%c5] : memref<12xf32, #tpu.memory_space<smem>>
    %c6 = arith.constant 6 : index
    %6 = memref.load %arg1[%c6] : memref<12xf32, #tpu.memory_space<smem>>
    %c7 = arith.constant 7 : index
    %7 = memref.load %arg1[%c7] : memref<12xf32, #tpu.memory_space<smem>>
    %c8 = arith.constant 8 : index
    %8 = memref.load %arg1[%c8] : memref<12xf32, #tpu.memory_space<smem>>
    %c9 = arith.constant 9 : index
    %9 = memref.load %arg1[%c9] : memref<12xf32, #tpu.memory_space<smem>>
    %c10 = arith.constant 10 : index
    %10 = memref.load %arg1[%c10] : memref<12xf32, #tpu.memory_space<smem>>
    %c11 = arith.constant 11 : index
    %11 = memref.load %arg1[%c11] : memref<12xf32, #tpu.memory_space<smem>>
    %c0_0 = arith.constant 0 : index
    %c0_1 = arith.constant 0 : index
    %c0_2 = arith.constant 0 : index
    %12 = vector.load %arg3[%c0_0, %c0_1, %c0_2] : memref<3x4x21xf32, #tpu.memory_space<vmem>>, vector<3x1x21xf32>
    %c0_3 = arith.constant 0 : index
    %c1_4 = arith.constant 1 : index
    %c0_5 = arith.constant 0 : index
    %13 = vector.load %arg3[%c0_3, %c1_4, %c0_5] : memref<3x4x21xf32, #tpu.memory_space<vmem>>, vector<3x1x21xf32>
    %c0_6 = arith.constant 0 : index
    %c2_7 = arith.constant 2 : index
    %c0_8 = arith.constant 0 : index
    %14 = vector.load %arg3[%c0_6, %c2_7, %c0_8] : memref<3x4x21xf32, #tpu.memory_space<vmem>>, vector<3x1x21xf32>
    %c0_9 = arith.constant 0 : index
    %c3_10 = arith.constant 3 : index
    %c0_11 = arith.constant 0 : index
    %15 = vector.load %arg3[%c0_9, %c3_10, %c0_11] : memref<3x4x21xf32, #tpu.memory_space<vmem>>, vector<3x1x21xf32>
    %16 = vector.broadcast %0 : f32 to vector<3x1x21xf32>
    %17 = arith.mulf %16, %12 : vector<3x1x21xf32>
    %18 = vector.broadcast %1 : f32 to vector<3x1x21xf32>
    %19 = arith.mulf %18, %13 : vector<3x1x21xf32>
    %20 = arith.addf %17, %19 : vector<3x1x21xf32>
    %21 = vector.broadcast %2 : f32 to vector<3x1x21xf32>
    %22 = arith.mulf %21, %14 : vector<3x1x21xf32>
    %23 = arith.addf %20, %22 : vector<3x1x21xf32>
    %24 = vector.broadcast %3 : f32 to vector<3x1x21xf32>
    %25 = arith.addf %23, %24 : vector<3x1x21xf32>
    %26 = vector.broadcast %4 : f32 to vector<3x1x21xf32>
    %27 = arith.mulf %26, %12 : vector<3x1x21xf32>
    %28 = vector.broadcast %5 : f32 to vector<3x1x21xf32>
    %29 = arith.mulf %28, %13 : vector<3x1x21xf32>
    %30 = arith.addf %27, %29 : vector<3x1x21xf32>
    %31 = vector.broadcast %6 : f32 to vector<3x1x21xf32>
    %32 = arith.mulf %31, %14 : vector<3x1x21xf32>
    %33 = arith.addf %30, %32 : vector<3x1x21xf32>
    %34 = vector.broadcast %7 : f32 to vector<3x1x21xf32>
    %35 = arith.addf %33, %34 : vector<3x1x21xf32>
    %36 = vector.broadcast %8 : f32 to vector<3x1x21xf32>
    %37 = arith.mulf %36, %12 : vector<3x1x21xf32>
    %38 = vector.broadcast %9 : f32 to vector<3x1x21xf32>
    %39 = arith.mulf %38, %13 : vector<3x1x21xf32>
    %40 = arith.addf %37, %39 : vector<3x1x21xf32>
    %41 = vector.broadcast %10 : f32 to vector<3x1x21xf32>
    %42 = arith.mulf %41, %14 : vector<3x1x21xf32>
    %43 = arith.addf %40, %42 : vector<3x1x21xf32>
    %44 = vector.broadcast %11 : f32 to vector<3x1x21xf32>
    %45 = arith.addf %43, %44 : vector<3x1x21xf32>
    %46 = arith.mulf %25, %25 : vector<3x1x21xf32>
    %47 = arith.mulf %35, %35 : vector<3x1x21xf32>
    %48 = arith.addf %46, %47 : vector<3x1x21xf32>
    %49 = arith.mulf %45, %45 : vector<3x1x21xf32>
    %50 = arith.addf %48, %49 : vector<3x1x21xf32>
    %c0_12 = arith.constant 0 : index
    %c0_13 = arith.constant 0 : index
    %c0_14 = arith.constant 0 : index
    %51 = vector.load %arg2[%c0_12, %c0_13, %c0_14] : memref<3x11x5xf32, #tpu.memory_space<vmem>>, vector<3x11x1xf32>
    %c0_15 = arith.constant 0 : index
    %c0_16 = arith.constant 0 : index
    %c1_17 = arith.constant 1 : index
    %52 = vector.load %arg2[%c0_15, %c0_16, %c1_17] : memref<3x11x5xf32, #tpu.memory_space<vmem>>, vector<3x11x1xf32>
    %c0_18 = arith.constant 0 : index
    %c0_19 = arith.constant 0 : index
    %c2_20 = arith.constant 2 : index
    %53 = vector.load %arg2[%c0_18, %c0_19, %c2_20] : memref<3x11x5xf32, #tpu.memory_space<vmem>>, vector<3x11x1xf32>
    %c0_21 = arith.constant 0 : index
    %c0_22 = arith.constant 0 : index
    %c3_23 = arith.constant 3 : index
    %54 = vector.load %arg2[%c0_21, %c0_22, %c3_23] : memref<3x11x5xf32, #tpu.memory_space<vmem>>, vector<3x11x1xf32>
    %c0_24 = arith.constant 0 : index
    %c0_25 = arith.constant 0 : index
    %c4_26 = arith.constant 4 : index
    %55 = vector.load %arg2[%c0_24, %c0_25, %c4_26] : memref<3x11x5xf32, #tpu.memory_space<vmem>>, vector<3x11x1xf32>
    %56 = vector.broadcast %51 : vector<3x11x1xf32> to vector<3x11x21xf32>
    %57 = vector.broadcast %25 : vector<3x1x21xf32> to vector<3x11x21xf32>
    %58 = arith.mulf %56, %57 : vector<3x11x21xf32>
    %59 = vector.broadcast %52 : vector<3x11x1xf32> to vector<3x11x21xf32>
    %60 = vector.broadcast %35 : vector<3x1x21xf32> to vector<3x11x21xf32>
    %61 = arith.mulf %59, %60 : vector<3x11x21xf32>
    %62 = arith.addf %58, %61 : vector<3x11x21xf32>
    %63 = vector.broadcast %53 : vector<3x11x1xf32> to vector<3x11x21xf32>
    %64 = vector.broadcast %45 : vector<3x1x21xf32> to vector<3x11x21xf32>
    %65 = arith.mulf %63, %64 : vector<3x11x21xf32>
    %66 = arith.addf %62, %65 : vector<3x11x21xf32>
    %67 = vector.broadcast %54 : vector<3x11x1xf32> to vector<3x11x21xf32>
    %68 = vector.broadcast %50 : vector<3x1x21xf32> to vector<3x11x21xf32>
    %69 = arith.addf %67, %68 : vector<3x11x21xf32>
    %70 = arith.cmpf olt, %69, %66 : vector<3x11x21xf32>
    %71 = arith.extui %70 : vector<3x11x21xi1> to vector<3x11x21xi32>
    %72 = arith.sitofp %71 : vector<3x11x21xi32> to vector<3x11x21xf32>
    %cst = arith.constant dense<0.000000e+00> : vector<3x11xf32>
    %73 = vector.multi_reduction <add>, %72, %cst [2] : vector<3x11x21xf32> to vector<3x11xf32>
    %74 = vector.shape_cast %73 : vector<3x11xf32> to vector<3x11x1xf32>
    %cst_27 = arith.constant dense<0.000000e+00> : vector<3x21xf32>
    %75 = vector.multi_reduction <add>, %72, %cst_27 [1] : vector<3x11x21xf32> to vector<3x21xf32>
    %76 = vector.shape_cast %75 : vector<3x21xf32> to vector<3x1x21xf32>
    %cst_28 = arith.constant 0.000000e+00 : f32
    %77 = vector.broadcast %cst_28 : f32 to vector<3x11x1xf32>
    %78 = arith.cmpf oeq, %74, %77 : vector<3x11x1xf32>
    %cst_29 = arith.constant 0.000000e+00 : f32
    %79 = vector.broadcast %cst_29 : f32 to vector<3x11x1xf32>
    %80 = arith.select %78, %55, %79 : vector<3x11x1xi1>, vector<3x11x1xf32>
    %cst_30 = arith.constant 0.000000e+00 : f32
    %81 = vector.broadcast %cst_30 : f32 to vector<3x1x21xf32>
    %82 = arith.cmpf oeq, %76, %81 : vector<3x1x21xf32>
    %cst_31 = arith.constant 0.000000e+00 : f32
    %83 = vector.broadcast %cst_31 : f32 to vector<3x1x21xf32>
    %84 = arith.select %82, %15, %83 : vector<3x1x21xi1>, vector<3x1x21xf32>
    %c0_32 = arith.constant 0 : index
    %c0_33 = arith.constant 0 : index
    %c0_34 = arith.constant 0 : index
    %85 = vector.load %arg4[%c0_32, %c0_33, %c0_34] : memref<3x11x21xf32, #tpu.memory_space<vmem>>, vector<3x11x21xf32>
    %86 = arith.mulf %85, %72 : vector<3x11x21xf32>
    %87 = vector.shape_cast %86 : vector<3x11x21xf32> to vector<1x3x11x21xf32>
    %cst_35 = arith.constant dense<0.000000e+00> : vector<1xf32>
    %88 = vector.multi_reduction <add>, %87, %cst_35 [1, 2, 3] : vector<1x3x11x21xf32> to vector<1xf32>
    %89 = vector.shape_cast %88 : vector<1xf32> to vector<1x1x1x1xf32>
    %90 = vector.extract %89[0, 0, 0, 0] : f32 from vector<1x1x1x1xf32>
    %c0_36 = arith.constant 0 : index
    %c0_37 = arith.constant 0 : index
    %c20 = arith.constant 20 : index
    %91 = vector.load %arg4[%c0_36, %c0_37, %c20] : memref<3x11x21xf32, #tpu.memory_space<vmem>>, vector<3x11x1xf32>
    %92 = arith.mulf %91, %80 : vector<3x11x1xf32>
    %93 = vector.shape_cast %92 : vector<3x11x1xf32> to vector<1x3x11x1xf32>
    %cst_38 = arith.constant dense<0.000000e+00> : vector<1xf32>
    %94 = vector.multi_reduction <add>, %93, %cst_38 [1, 2, 3] : vector<1x3x11x1xf32> to vector<1xf32>
    %95 = vector.shape_cast %94 : vector<1xf32> to vector<1x1x1x1xf32>
    %96 = vector.extract %95[0, 0, 0, 0] : f32 from vector<1x1x1x1xf32>
    %97 = arith.addf %90, %96 : f32
    %c0_39 = arith.constant 0 : index
    %c10_40 = arith.constant 10 : index
    %c0_41 = arith.constant 0 : index
    %98 = vector.load %arg4[%c0_39, %c10_40, %c0_41] : memref<3x11x21xf32, #tpu.memory_space<vmem>>, vector<3x1x21xf32>
    %99 = arith.mulf %98, %84 : vector<3x1x21xf32>
    %100 = vector.shape_cast %99 : vector<3x1x21xf32> to vector<1x3x1x21xf32>
    %cst_42 = arith.constant dense<0.000000e+00> : vector<1xf32>
    %101 = vector.multi_reduction <add>, %100, %cst_42 [1, 2, 3] : vector<1x3x1x21xf32> to vector<1xf32>
    %102 = vector.shape_cast %101 : vector<1xf32> to vector<1x1x1x1xf32>
    %103 = vector.extract %102[0, 0, 0, 0] : f32 from vector<1x1x1x1xf32>
    %104 = arith.addf %97, %103 : f32
    %105 = vector.shape_cast %74 : vector<3x11x1xf32> to vector<1x3x11x1xf32>
    %cst_43 = arith.constant dense<0.000000e+00> : vector<1xf32>
    %106 = vector.multi_reduction <add>, %105, %cst_43 [1, 2, 3] : vector<1x3x11x1xf32> to vector<1xf32>
    %107 = vector.shape_cast %106 : vector<1xf32> to vector<1x1x1x1xf32>
    %108 = vector.extract %107[0, 0, 0, 0] : f32 from vector<1x1x1x1xf32>
    %109 = vector.shape_cast %80 : vector<3x11x1xf32> to vector<1x3x11x1xf32>
    %cst_44 = arith.constant dense<0.000000e+00> : vector<1xf32>
    %110 = vector.multi_reduction <add>, %109, %cst_44 [1, 2, 3] : vector<1x3x11x1xf32> to vector<1xf32>
    %111 = vector.shape_cast %110 : vector<1xf32> to vector<1x1x1x1xf32>
    %112 = vector.extract %111[0, 0, 0, 0] : f32 from vector<1x1x1x1xf32>
    %113 = arith.addf %108, %112 : f32
    %114 = vector.shape_cast %84 : vector<3x1x21xf32> to vector<1x3x1x21xf32>
    %cst_45 = arith.constant dense<0.000000e+00> : vector<1xf32>
    %115 = vector.multi_reduction <add>, %114, %cst_45 [1, 2, 3] : vector<1x3x1x21xf32> to vector<1xf32>
    %116 = vector.shape_cast %115 : vector<1xf32> to vector<1x1x1x1xf32>
    %117 = vector.extract %116[0, 0, 0, 0] : f32 from vector<1x1x1x1xf32>
    %118 = arith.addf %113, %117 : f32
    %119 = tpu.iota {dimensions = array<i32: 2>} : vector<1x8x128xi32>
    %120 = tpu.iota {dimensions = array<i32: 1>} : vector<1x8x128xi32>
    %c0_i32 = arith.constant 0 : i32
    %121 = vector.broadcast %c0_i32 : i32 to vector<1x8x128xi32>
    %122 = arith.cmpi eq, %120, %121 : vector<1x8x128xi32>
    %c0_i32_46 = arith.constant 0 : i32
    %123 = vector.broadcast %c0_i32_46 : i32 to vector<1x8x128xi32>
    %124 = arith.cmpi eq, %119, %123 : vector<1x8x128xi32>
    %125 = arith.andi %122, %124 : vector<1x8x128xi1>
    %c0_i32_47 = arith.constant 0 : i32
    %126 = vector.broadcast %c0_i32_47 : i32 to vector<1x8x128xi32>
    %127 = arith.cmpi eq, %120, %126 : vector<1x8x128xi32>
    %c1_i32 = arith.constant 1 : i32
    %128 = vector.broadcast %c1_i32 : i32 to vector<1x8x128xi32>
    %129 = arith.cmpi eq, %119, %128 : vector<1x8x128xi32>
    %130 = arith.andi %127, %129 : vector<1x8x128xi1>
    %cst_48 = arith.constant 0.000000e+00 : f32
    %131 = vector.broadcast %118 : f32 to vector<1x8x128xf32>
    %132 = vector.broadcast %cst_48 : f32 to vector<1x8x128xf32>
    %133 = arith.select %130, %131, %132 : vector<1x8x128xi1>, vector<1x8x128xf32>
    %134 = vector.broadcast %104 : f32 to vector<1x8x128xf32>
    %135 = arith.select %125, %134, %133 : vector<1x8x128xi1>, vector<1x8x128xf32>
    %c0_49 = arith.constant 0 : index
    %c0_50 = arith.constant 0 : index
    %c0_51 = arith.constant 0 : index
    %136 = vector.load %arg5[%c0_49, %c0_50, %c0_51] : memref<1x8x128xf32, #tpu.memory_space<vmem>>, vector<1x8x128xf32>
    tpu.vector_store %arg5[%c0_49, %c0_50, %c0_51], %135 {strides = array<i32>} : memref<1x8x128xf32, #tpu.memory_space<vmem>>, vector<1x8x128xf32>,
    return
  }
  func.func @transform_0(%arg0: i32) -> i32 {
    %c0_i32 = arith.constant 0 : i32
    %c0_i32_0 = arith.constant 0 : i32
    return %c0_i32 : i32
  }
  func.func @transform_1(%arg0: i32) -> (i32, i32, i32) {
    %c0_i32 = arith.constant 0 : i32
    %c0_i32_0 = arith.constant 0 : i32
    %c0_i32_1 = arith.constant 0 : i32
    return %arg0, %c0_i32, %c0_i32_0 : i32, i32, i32
  }
  func.func @transform_2(%arg0: i32) -> (i32, i32, i32) {
    %c0_i32 = arith.constant 0 : i32
    %c0_i32_0 = arith.constant 0 : i32
    %c0_i32_1 = arith.constant 0 : i32
    return %arg0, %c0_i32, %c0_i32_0 : i32, i32, i32
  }
  func.func @transform_3(%arg0: i32) -> (i32, i32, i32) {
    %c0_i32 = arith.constant 0 : i32
    %c0_i32_0 = arith.constant 0 : i32
    %c0_i32_1 = arith.constant 0 : i32
    return %arg0, %c0_i32, %c0_i32_0 : i32, i32, i32
  }
  func.func @transform_4(%arg0: i32) -> (i32, i32, i32) {
    %c0_i32 = arith.constant 0 : i32
    %c0_i32_0 = arith.constant 0 : i32
    %c0_i32_1 = arith.constant 0 : i32
    return %arg0, %c0_i32, %c0_i32_0 : i32, i32, i32
  }
}

</mosaic_0001>

<llo_original>
// kernel: tpu_custom_call.1
$region0: #{tpu_custom_call.1}
  #allocation0 [shape = 'u32[]', space=smem, size = 0x4, offset = 0x4, fixed_abs, tag = 'smem constant byte address 0x4 - core index']
  #allocation1 [shape = 'u32[144,128]{1,0:T(1,128)}', space=vmem, size = 0x12000, scoped, tag = 'internal scratch']
  %s0 = inlined_call_operand.vmem [shape: f32[12], index: 0, kind: input, shape index: {}]
  %s1 = inlined_call_operand.vmem [shape: f32[6,11,5], index: 1, kind: input, shape index: {}]
  %s2 = inlined_call_operand.vmem [shape: f32[6,4,21], index: 2, kind: input, shape index: {}]
  %s3 = inlined_call_operand.vmem [shape: f32[6,11,21], index: 3, kind: input, shape index: {}]
  %s4 = inlined_call_operand.hbm [shape: f32[2,8,128], index: 4, kind: output, shape index: {}]
  %s5 = sld [smem:[#allocation0]]
  $region53: #{tpu_custom_call.1} parent=0
    _
  %s7 = ssub.s32 1, %s5
  %s8 = scalar_select 0, %s7, %s5
  $region1: #{tpu_custom_call.1} parent=0
    #allocation2 [shape = 'u8[512]{0}', space=smem, size = 0x200, scoped, tag = 'input window, operand 0, single buffered']
    #allocation3 [shape = 's32[2]{0}', space=sflag, size = 0x8, scoped, tag = 'scoped memory for tpu_custom_call.1']
    #allocation4 [shape = 's32[2]{0}', space=sflag, size = 0x8, scoped, tag = 'scoped memory for tpu_custom_call.1']
    #allocation5 [shape = 'u8[8192]{0}', space=vmem, size = 0x2000, scoped, tag = 'output window, operand 0']
    %9 = vsyncpa [#allocation4], 0
    %10 = vsyncpa [#allocation3], 0
    %s11 = scalar_lea.sflag [#allocation3], 1
    %12 = vsyncpa %s11, 0
    loop: start=0, step=1, limit=4
    $region2: #{tpu_custom_call.1} parent=1 // loop_pre_header
      _
    $region3: #{tpu_custom_call.1} parent=1 // loop_header
      %s14 = sphi 0, %s18
      %p15 = scmp.ge.s32.totalorder %s14, 4
      %s22 = sphi 0, %s22
      %s24 = sphi 0, %s22
      %s25 = sphi 0, %s24
      %s39 = sphi 0, %s25
      %s45 = sphi 0, %s47
      %s48 = sphi 0, %s45
      %s49 = sphi 0, %s48
      %s65 = sphi 0, %s49
      %s71 = sphi 0, %s73
      %s74 = sphi 0, %s71
      %s75 = sphi 0, %s74
      %s91 = sphi 0, %s75
      %s97 = sphi 0, %s99
      %s100 = sphi 0, %s97
      %s101 = sphi 0, %s100
      %s117 = sphi 0, %s101
      %s123 = sphi 0, %s125
      %s126 = sphi 0, %s123
      %s127 = sphi 0, %s126
      %s143 = sphi 0, %s127
    $region4: #{tpu_custom_call.1} parent=1 // loop_header_branch
      %17 = sbr.rel (%p15) target = $region8
    $region5: #{tpu_custom_call.1} parent=1 // loop_body
      %s19 = ssub.s32 %s14, 1
      %s20 = ssub.s32 %s14, 2
      %s21 = sadd.s32 %s14, 1
      %s23 = sadd.s32 %s22, 1
      %p26 = scmp.eq.s32.totalorder %s14, 1
      %p27 = scmp.ne.s32.totalorder %s22, %s24
      %p28 = scmp.eq.s32.totalorder %s14, 0
      %p29 = por %p27, %p28
      %p30 = scmp.ne.s32.totalorder %s22, %s24
      %p31 = scmp.eq.s32.totalorder %s19, 1
      %p32 = por %p30, %p31
      %p33 = scmp.ne.s32.totalorder %s24, %s25
      %p34 = scmp.eq.s32.totalorder %s19, 0
      %p35 = por %p33, %p34
      %p36 = scmp.ne.s32.totalorder %s24, %s25
      %p37 = scmp.eq.s32.totalorder %s20, 1
      %p38 = por %p36, %p37
      %p40 = scmp.ne.s32.totalorder %s25, %s39
      %p41 = scmp.eq.s32.totalorder %s20, 0
      %p42 = por %p40, %p41
      %s43 = ssub.s32 %s14, %s21
      %p44 = scmp.eq.s32.totalorder %s43, 0
      %s46 = sadd.s32 %s45, 1
      %s47 = scalar_select %p44, %s45, %s46
      %p50 = pneg %p44
      %p51 = scmp.eq.s32.totalorder %s14, 1
      %p52 = por %p50, %p51
      %p53 = scmp.ne.s32.totalorder %s45, %s48
      %p54 = scmp.eq.s32.totalorder %s14, 0
      %p55 = por %p53, %p54
      %p56 = scmp.ne.s32.totalorder %s45, %s48
      %p57 = scmp.eq.s32.totalorder %s19, 1
      %p58 = por %p56, %p57
      %p59 = scmp.ne.s32.totalorder %s48, %s49
      %p60 = scmp.eq.s32.totalorder %s19, 0
      %p61 = por %p59, %p60
      %p62 = scmp.ne.s32.totalorder %s48, %s49
      %p63 = scmp.eq.s32.totalorder %s20, 1
      %p64 = por %p62, %p63
      %p66 = scmp.ne.s32.totalorder %s49, %s65
      %p67 = scmp.eq.s32.totalorder %s20, 0
      %p68 = por %p66, %p67
      %s69 = ssub.s32 %s14, %s21
      %p70 = scmp.eq.s32.totalorder %s69, 0
      %s72 = sadd.s32 %s71, 1
      %s73 = scalar_select %p70, %s71, %s72
      %p76 = pneg %p70
      %p77 = scmp.eq.s32.totalorder %s14, 1
      %p78 = por %p76, %p77
      %p79 = scmp.ne.s32.totalorder %s71, %s74
      %p80 = scmp.eq.s32.totalorder %s14, 0
      %p81 = por %p79, %p80
      %p82 = scmp.ne.s32.totalorder %s71, %s74
      %p83 = scmp.eq.s32.totalorder %s19, 1
      %p84 = por %p82, %p83
      %p85 = scmp.ne.s32.totalorder %s74, %s75
      %p86 = scmp.eq.s32.totalorder %s19, 0
      %p87 = por %p85, %p86
      %p88 = scmp.ne.s32.totalorder %s74, %s75
      %p89 = scmp.eq.s32.totalorder %s20, 1
      %p90 = por %p88, %p89
      %p92 = scmp.ne.s32.totalorder %s75, %s91
      %p93 = scmp.eq.s32.totalorder %s20, 0
      %p94 = por %p92, %p93
      %s95 = ssub.s32 %s14, %s21
      %p96 = scmp.eq.s32.totalorder %s95, 0
      %s98 = sadd.s32 %s97, 1
      %s99 = scalar_select %p96, %s97, %s98
      %p102 = pneg %p96
      %p103 = scmp.eq.s32.totalorder %s14, 1
      %p104 = por %p102, %p103
      %p105 = scmp.ne.s32.totalorder %s97, %s100
      %p106 = scmp.eq.s32.totalorder %s14, 0
      %p107 = por %p105, %p106
      %p108 = scmp.ne.s32.totalorder %s97, %s100
      %p109 = scmp.eq.s32.totalorder %s19, 1
      %p110 = por %p108, %p109
      %p111 = scmp.ne.s32.totalorder %s100, %s101
      %p112 = scmp.eq.s32.totalorder %s19, 0
      %p113 = por %p111, %p112
      %p114 = scmp.ne.s32.totalorder %s100, %s101
      %p115 = scmp.eq.s32.totalorder %s20, 1
      %p116 = por %p114, %p115
      %p118 = scmp.ne.s32.totalorder %s101, %s117
      %p119 = scmp.eq.s32.totalorder %s20, 0
      %p120 = por %p118, %p119
      %s121 = ssub.s32 %s14, %s21
      %p122 = scmp.eq.s32.totalorder %s121, 0
      %s124 = sadd.s32 %s123, 1
      %s125 = scalar_select %p122, %s123, %s124
      %p128 = pneg %p122
      %p129 = scmp.eq.s32.totalorder %s14, 1
      %p130 = por %p128, %p129
      %p131 = scmp.ne.s32.totalorder %s123, %s126
      %p132 = scmp.eq.s32.totalorder %s14, 0
      %p133 = por %p131, %p132
      %p134 = scmp.ne.s32.totalorder %s123, %s126
      %p135 = scmp.eq.s32.totalorder %s19, 1
      %p136 = por %p134, %p135
      %p137 = scmp.ne.s32.totalorder %s126, %s127
      %p138 = scmp.eq.s32.totalorder %s19, 0
      %p139 = por %p137, %p138
      %p140 = scmp.ne.s32.totalorder %s126, %s127
      %p141 = scmp.eq.s32.totalorder %s20, 1
      %p142 = por %p140, %p141
      %p144 = scmp.ne.s32.totalorder %s127, %s143
      %p145 = scmp.eq.s32.totalorder %s20, 0
      %p146 = por %p144, %p145
      %p147 = scmp.le.s32.totalorder 1, %s14
      %p148 = scmp.lt.s32.totalorder %s14, 3
      %p149 = pnand %p147, %p148
      %p150 = pneg %p149
      // Predicated region
      $region9: #{tpu_custom_call.1} parent=5 // pred_check
        _
      $region10: #{tpu_custom_call.1} parent=5 // pred_check_branch
        %152 = sbr.rel (%p149) target = $region12
      $region11: #{tpu_custom_call.1} parent=5 // pred_region
        %s153 = ssub.s32 %s14, 1
        // Predicated region
        $region13: #{tpu_custom_call.1} parent=11 // pred_check
          %p154 = pneg %p35
        $region14: #{tpu_custom_call.1} parent=11 // pred_check_branch
          %156 = sbr.rel (%p154) target = $region16
        $region15: #{tpu_custom_call.1} parent=11 // pred_region
          %s158 = ssub.s32 16, 16
          %159 = vsyncadd [#allocation4], %s158
          %s161 = sshll.u32 %s0, 4
          %s162 = int_to_ptr.vmem [resolvable:$true] %s161
          %164 = dma.vmem_to_smem %s162, 16, [#allocation2], [#allocation4]
        $region16: #{tpu_custom_call.1} parent=11 // pred_fallthru
          _
      $region12: #{tpu_custom_call.1} parent=5 // pred_fallthru
        _
      %p165 = scmp.lt.s32.totalorder %s14, 2
      // Predicated region
      $region17: #{tpu_custom_call.1} parent=5 // pred_check
        %p166 = pneg %p165
      $region18: #{tpu_custom_call.1} parent=5 // pred_check_branch
        %168 = sbr.rel (%p166) target = $region20
      $region19: #{tpu_custom_call.1} parent=5 // pred_region
        // Predicated region
        $region21: #{tpu_custom_call.1} parent=19 // pred_check
          %p169 = pneg %p55
        $region22: #{tpu_custom_call.1} parent=19 // pred_check_branch
          %171 = sbr.rel (%p169) target = $region24
        $region23: #{tpu_custom_call.1} parent=19 // pred_region
          %s172 = smul.u32 3, %s14
          %p173 = scmp.lt.s32.totalorder %s172, 5
          %s174 = scalar_select %p173, %s172, 5
          %s175 = smul.addr %s174, 2
          %s176 = smul.addr %s175, 8
          %s177 = scalar_lea.vmem %s1, %s176
          %s178 = smul.u32 3, %s14
        $region24: #{tpu_custom_call.1} parent=19 // pred_fallthru
          _
        // Predicated region
        $region25: #{tpu_custom_call.1} parent=19 // pred_check
          %p179 = pneg %p81
        $region26: #{tpu_custom_call.1} parent=19 // pred_check_branch
          %181 = sbr.rel (%p179) target = $region28
        $region27: #{tpu_custom_call.1} parent=19 // pred_region
          %s182 = smul.u32 3, %s14
          %p183 = scmp.lt.s32.totalorder %s182, 5
          %s184 = scalar_select %p183, %s182, 5
          %s185 = smul.addr %s184, 4
          %s186 = scalar_lea.vmem %s2, %s185
          %s187 = smul.u32 3, %s14
        $region28: #{tpu_custom_call.1} parent=19 // pred_fallthru
          _
        // Predicated region
        $region29: #{tpu_custom_call.1} parent=19 // pred_check
          %p188 = pneg %p107
        $region30: #{tpu_custom_call.1} parent=19 // pred_check_branch
          %190 = sbr.rel (%p188) target = $region32
        $region31: #{tpu_custom_call.1} parent=19 // pred_region
          %s191 = smul.u32 3, %s14
          %p192 = scmp.lt.s32.totalorder %s191, 5
          %s193 = scalar_select %p192, %s191, 5
          %s194 = smul.addr %s193, 2
          %s195 = smul.addr %s194, 8
          %s196 = scalar_lea.vmem %s3, %s195
          %s197 = smul.u32 3, %s14
        $region32: #{tpu_custom_call.1} parent=19 // pred_fallthru
          _
      $region20: #{tpu_custom_call.1} parent=5 // pred_fallthru
        _
      %p198 = scmp.le.s32.totalorder 1, %s14
      %p199 = scmp.lt.s32.totalorder %s14, 3
      %p200 = pnand %p198, %p199
      %p201 = pneg %p200
      // Predicated region
      $region33: #{tpu_custom_call.1} parent=5 // pred_check
        _
      $region34: #{tpu_custom_call.1} parent=5 // pred_check_branch
        %203 = sbr.rel (%p200) target = $region36
      $region35: #{tpu_custom_call.1} parent=5 // pred_region
        %s204 = ssub.s32 %s14, 1
        // Predicated region
        $region37: #{tpu_custom_call.1} parent=35 // pred_check
          %p205 = pneg %p35
        $region38: #{tpu_custom_call.1} parent=35 // pred_check_branch
          %207 = sbr.rel (%p205) target = $region40
        $region39: #{tpu_custom_call.1} parent=35 // pred_region
          %208 = dma.done [#allocation4], 16
        $region40: #{tpu_custom_call.1} parent=35 // pred_fallthru
          _
        %209 = sfence
        %p210 = pneg %p35
        %p211 = pneg %p32
        %s212 = smul.u32 3, %s19
        %p213 = scmp.lt.s32.totalorder %s212, 5
        %s214 = scalar_select %p213, %s212, 5
        %s215 = smul.addr %s214, 2
        %s216 = smul.addr %s215, 8
        %s217 = scalar_lea.vmem %s1, %s216
        %p218 = pneg %p61
        %p219 = pneg %p58
        %s220 = smul.u32 3, %s19
        %p221 = scmp.lt.s32.totalorder %s220, 5
        %s222 = scalar_select %p221, %s220, 5
        %s223 = smul.addr %s222, 4
        %s224 = scalar_lea.vmem %s2, %s223
        %p225 = pneg %p87
        %p226 = pneg %p84
        %s227 = smul.u32 3, %s19
        %p228 = scmp.lt.s32.totalorder %s227, 5
        %s229 = scalar_select %p228, %s227, 5
        %s230 = smul.addr %s229, 2
        %s231 = smul.addr %s230, 8
        %s232 = scalar_lea.vmem %s3, %s231
        %p233 = pneg %p113
        %p234 = pneg %p110
        %p235 = pneg %p139
        %p236 = pneg %p136
        %s237 = sand.u32 %s126, 1
        %s238 = scalar_lea.sflag [#allocation3], %s237
        %s239 = sand.u32 %s126, 1
        %s240 = smul.addr %s239, 8
        %s241 = scalar_lea.vmem [#allocation5], %s240
        %s242 = smul.u32 3, %s19
        %p243 = scmp.lt.s32.totalorder %s242, 5
        %s244 = scalar_select %p243, %s242, 5
        %s245 = smul.addr %s244, 2
        %s246 = smul.addr %s245, 8
        %s247 = scalar_lea.vmem %s1, %s246
        %s248 = smul.u32 3, %s19
        %s249 = smul.u32 3, %s19
        %p250 = scmp.lt.s32.totalorder %s249, 5
        %s251 = scalar_select %p250, %s249, 5
        %s252 = smul.addr %s251, 4
        %s253 = scalar_lea.vmem %s2, %s252
        %s254 = smul.u32 3, %s19
        %s255 = smul.u32 3, %s19
        %p256 = scmp.lt.s32.totalorder %s255, 5
        %s257 = scalar_select %p256, %s255, 5
        %s258 = smul.addr %s257, 2
        %s259 = smul.addr %s258, 8
        %s260 = scalar_lea.vmem %s3, %s259
        %s261 = smul.u32 3, %s19
        %s262 = sld [smem:[#allocation2]]
        %s263 = sld [smem:[#allocation2 + $0x1]]
        %s264 = sld [smem:[#allocation2 + $0x2]]
        %s265 = sld [smem:[#allocation2 + $0x3]]
        %s266 = sld [smem:[#allocation2 + $0x4]]
        %s267 = sld [smem:[#allocation2 + $0x5]]
        %s268 = sld [smem:[#allocation2 + $0x6]]
        %s269 = sld [smem:[#allocation2 + $0x7]]
        %s270 = sld [smem:[#allocation2 + $0x8]]
        %s271 = sld [smem:[#allocation2 + $0x9]]
        %s272 = sld [smem:[#allocation2 + $0xa]]
        %s273 = sld [smem:[#allocation2 + $0xb]]
        %v274 = vld [vmem:[%s253] sm:$0x1]
        %v275 = vld [vmem:[%s253 + $0x4] sm:$0x1]
        %v276 = vld [vmem:[%s253 + $0x8] sm:$0x1]
        %v277 = vld [vmem:[%s253 + $0x1] sm:$0x1]
        %v278 = vld [vmem:[%s253 + $0x5] sm:$0x1]
        %v279 = vld [vmem:[%s253 + $0x9] sm:$0x1]
        %v280 = vld [vmem:[%s253 + $0x2] sm:$0x1]
        %v281 = vld [vmem:[%s253 + $0x6] sm:$0x1]
        %v282 = vld [vmem:[%s253 + $0xa] sm:$0x1]
        %v283 = vld [vmem:[%s253 + $0x3] sm:$0x1]
        %v284 = vld [vmem:[%s253 + $0x7] sm:$0x1]
        %v285 = vld [vmem:[%s253 + $0xb] sm:$0x1]
        %v286 = vstv %s262
        %v287 = vmul.f32 %v286, %v274
        %v288 = vmul.f32 %v286, %v275
        %v289 = vmul.f32 %v286, %v276
        %v290 = vstv %s263
        %v291 = vmul.f32 %v290, %v277
        %v292 = vmul.f32 %v290, %v278
        %v293 = vmul.f32 %v290, %v279
        %v294 = vadd.f32 %v287, %v291
        %v295 = vadd.f32 %v288, %v292
        %v296 = vadd.f32 %v289, %v293
        %v297 = vstv %s264
        %v298 = vmul.f32 %v297, %v280
        %v299 = vmul.f32 %v297, %v281
        %v300 = vmul.f32 %v297, %v282
        %v301 = vadd.f32 %v294, %v298
        %v302 = vadd.f32 %v295, %v299
        %v303 = vadd.f32 %v296, %v300
        %v304 = vstv %s265
        %v305 = vadd.f32 %v301, %v304
        %v306 = vadd.f32 %v302, %v304
        %v307 = vadd.f32 %v303, %v304
        %v308 = vstv %s266
        %v309 = vmul.f32 %v308, %v274
        %v310 = vmul.f32 %v308, %v275
        %v311 = vmul.f32 %v308, %v276
        %v312 = vstv %s267
        %v313 = vmul.f32 %v312, %v277
        %v314 = vmul.f32 %v312, %v278
        %v315 = vmul.f32 %v312, %v279
        %v316 = vadd.f32 %v309, %v313
        %v317 = vadd.f32 %v310, %v314
        %v318 = vadd.f32 %v311, %v315
        %v319 = vstv %s268
        %v320 = vmul.f32 %v319, %v280
        %v321 = vmul.f32 %v319, %v281
        %v322 = vmul.f32 %v319, %v282
        %v323 = vadd.f32 %v316, %v320
        %v324 = vadd.f32 %v317, %v321
        %v325 = vadd.f32 %v318, %v322
        %v326 = vstv %s269
        %v327 = vadd.f32 %v323, %v326
        %v328 = vadd.f32 %v324, %v326
        %v329 = vadd.f32 %v325, %v326
        %v330 = vstv %s270
        %v331 = vmul.f32 %v330, %v274
        %v332 = vmul.f32 %v330, %v275
        %v333 = vmul.f32 %v330, %v276
        %v334 = vstv %s271
        %v335 = vmul.f32 %v334, %v277
        %v336 = vmul.f32 %v334, %v278
        %v337 = vmul.f32 %v334, %v279
        %v338 = vadd.f32 %v331, %v335
        %v339 = vadd.f32 %v332, %v336
        %v340 = vadd.f32 %v333, %v337
        %v341 = vstv %s272
        %v342 = vmul.f32 %v341, %v280
        %v343 = vmul.f32 %v341, %v281
        %v344 = vmul.f32 %v341, %v282
        %v345 = vadd.f32 %v338, %v342
        %v346 = vadd.f32 %v339, %v343
        %v347 = vadd.f32 %v340, %v344
        %v348 = vstv %s273
        %v349 = vadd.f32 %v345, %v348
        %v350 = vadd.f32 %v346, %v348
        %v351 = vadd.f32 %v347, %v348
        %v352 = vmul.f32 %v305, %v305
        %v353 = vmul.f32 %v306, %v306
        %v354 = vmul.f32 %v307, %v307
        %v355 = vmul.f32 %v327, %v327
        %v356 = vmul.f32 %v328, %v328
        %v357 = vmul.f32 %v329, %v329
        %v358 = vadd.f32 %v352, %v355
        %v359 = vadd.f32 %v353, %v356
        %v360 = vadd.f32 %v354, %v357
        %v361 = vmul.f32 %v349, %v349
        %v362 = vmul.f32 %v350, %v350
        %v363 = vmul.f32 %v351, %v351
        %v364 = vadd.f32 %v358, %v361
        %v365 = vadd.f32 %v359, %v362
        %v366 = vadd.f32 %v360, %v363
        %v367 = vld [vmem:[%s247] sm:$0xff]
        %v368 = vld [vmem:[%s247 + $0x8] sm:$0x7]
        %v369 = vld [vmem:[%s247 + $0x10] sm:$0xff]
        %v370 = vld [vmem:[%s247 + $0x18] sm:$0x7]
        %v371 = vld [vmem:[%s247 + $0x20] sm:$0xff]
        %v372 = vld [vmem:[%s247 + $0x28] sm:$0x7]
        %374 = vset.pattern.permute.xlu0 0
        %375 = vperm.xlu0 %374, %v367
        %v376 = vpop.permute.xlu0 %375
        %379 = vset.pattern.permute.xlu0 0
        %380 = vperm.xlu0 %379, %v368
        %v381 = vpop.permute.xlu0 %380
        %384 = vset.pattern.permute.xlu0 0
        %385 = vperm.xlu0 %384, %v369
        %v386 = vpop.permute.xlu0 %385
        %389 = vset.pattern.permute.xlu0 0
        %390 = vperm.xlu0 %389, %v370
        %v391 = vpop.permute.xlu0 %390
        %394 = vset.pattern.permute.xlu0 0
        %395 = vperm.xlu0 %394, %v371
        %v396 = vpop.permute.xlu0 %395
        %399 = vset.pattern.permute.xlu0 0
        %400 = vperm.xlu0 %399, %v372
        %v401 = vpop.permute.xlu0 %400
        %v403 = vlaneseq
        %v404 = vshrl.u32 %v403, 7
        %v405 = vsub.s32 0, %v404
        %v406 = vrot.slane %v305, %v405
        %v407 = vlaneseq
        %v408 = vshrl.u32 %v407, 7
        %v409 = vsub.s32 0, %v408
        %v410 = vrot.slane %v306, %v409
        %v411 = vlaneseq
        %v412 = vshrl.u32 %v411, 7
        %v413 = vsub.s32 0, %v412
        %v414 = vrot.slane %v307, %v413
        %v415 = vmul.f32 %v376, %v406
        %v416 = vmul.f32 %v381, %v406
        %v417 = vmul.f32 %v386, %v410
        %v418 = vmul.f32 %v391, %v410
        %v419 = vmul.f32 %v396, %v414
        %v420 = vmul.f32 %v401, %v414
        %421 = vset.pattern.permute.xlu0 1
        %422 = vperm.xlu0 %421, %v367
        %v423 = vpop.permute.xlu0 %422
        %425 = vset.pattern.permute.xlu0 1
        %426 = vperm.xlu0 %425, %v368
        %v427 = vpop.permute.xlu0 %426
        %429 = vset.pattern.permute.xlu0 1
        %430 = vperm.xlu0 %429, %v369
        %v431 = vpop.permute.xlu0 %430
        %433 = vset.pattern.permute.xlu0 1
        %434 = vperm.xlu0 %433, %v370
        %v435 = vpop.permute.xlu0 %434
        %437 = vset.pattern.permute.xlu0 1
        %438 = vperm.xlu0 %437, %v371
        %v439 = vpop.permute.xlu0 %438
        %441 = vset.pattern.permute.xlu0 1
        %442 = vperm.xlu0 %441, %v372
        %v443 = vpop.permute.xlu0 %442
        %v445 = vlaneseq
        %v446 = vshrl.u32 %v445, 7
        %v447 = vsub.s32 0, %v446
        %v448 = vrot.slane %v327, %v447
        %v449 = vlaneseq
        %v450 = vshrl.u32 %v449, 7
        %v451 = vsub.s32 0, %v450
        %v452 = vrot.slane %v328, %v451
        %v453 = vlaneseq
        %v454 = vshrl.u32 %v453, 7
        %v455 = vsub.s32 0, %v454
        %v456 = vrot.slane %v329, %v455
        %v457 = vmul.f32 %v423, %v448
        %v458 = vmul.f32 %v427, %v448
        %v459 = vmul.f32 %v431, %v452
        %v460 = vmul.f32 %v435, %v452
        %v461 = vmul.f32 %v439, %v456
        %v462 = vmul.f32 %v443, %v456
        %v463 = vadd.f32 %v415, %v457
        %v464 = vadd.f32 %v416, %v458
        %v465 = vadd.f32 %v417, %v459
        %v466 = vadd.f32 %v418, %v460
        %v467 = vadd.f32 %v419, %v461
        %v468 = vadd.f32 %v420, %v462
        %469 = vset.pattern.permute.xlu0 2
        %470 = vperm.xlu0 %469, %v367
        %v471 = vpop.permute.xlu0 %470
        %473 = vset.pattern.permute.xlu0 2
        %474 = vperm.xlu0 %473, %v368
        %v475 = vpop.permute.xlu0 %474
        %477 = vset.pattern.permute.xlu0 2
        %478 = vperm.xlu0 %477, %v369
        %v479 = vpop.permute.xlu0 %478
        %481 = vset.pattern.permute.xlu0 2
        %482 = vperm.xlu0 %481, %v370
        %v483 = vpop.permute.xlu0 %482
        %485 = vset.pattern.permute.xlu0 2
        %486 = vperm.xlu0 %485, %v371
        %v487 = vpop.permute.xlu0 %486
        %489 = vset.pattern.permute.xlu0 2
        %490 = vperm.xlu0 %489, %v372
        %v491 = vpop.permute.xlu0 %490
        %v493 = vlaneseq
        %v494 = vshrl.u32 %v493, 7
        %v495 = vsub.s32 0, %v494
        %v496 = vrot.slane %v349, %v495
        %v497 = vlaneseq
        %v498 = vshrl.u32 %v497, 7
        %v499 = vsub.s32 0, %v498
        %v500 = vrot.slane %v350, %v499
        %v501 = vlaneseq
        %v502 = vshrl.u32 %v501, 7
        %v503 = vsub.s32 0, %v502
        %v504 = vrot.slane %v351, %v503
        %v505 = vmul.f32 %v471, %v496
        %v506 = vmul.f32 %v475, %v496
        %v507 = vmul.f32 %v479, %v500
        %v508 = vmul.f32 %v483, %v500
        %v509 = vmul.f32 %v487, %v504
        %v510 = vmul.f32 %v491, %v504
        %v511 = vadd.f32 %v463, %v505
        %v512 = vadd.f32 %v464, %v506
        %v513 = vadd.f32 %v465, %v507
        %v514 = vadd.f32 %v466, %v508
        %v515 = vadd.f32 %v467, %v509
        %v516 = vadd.f32 %v468, %v510
        %517 = vset.pattern.permute.xlu0 3
        %518 = vperm.xlu0 %517, %v367
        %v519 = vpop.permute.xlu0 %518
        %521 = vset.pattern.permute.xlu0 3
        %522 = vperm.xlu0 %521, %v368
        %v523 = vpop.permute.xlu0 %522
        %525 = vset.pattern.permute.xlu0 3
        %526 = vperm.xlu0 %525, %v369
        %v527 = vpop.permute.xlu0 %526
        %529 = vset.pattern.permute.xlu0 3
        %530 = vperm.xlu0 %529, %v370
        %v531 = vpop.permute.xlu0 %530
        %533 = vset.pattern.permute.xlu0 3
        %534 = vperm.xlu0 %533, %v371
        %v535 = vpop.permute.xlu0 %534
        %537 = vset.pattern.permute.xlu0 3
        %538 = vperm.xlu0 %537, %v372
        %v539 = vpop.permute.xlu0 %538
        %v541 = vlaneseq
        %v542 = vshrl.u32 %v541, 7
        %v543 = vsub.s32 0, %v542
        %v544 = vrot.slane %v364, %v543
        %v545 = vlaneseq
        %v546 = vshrl.u32 %v545, 7
        %v547 = vsub.s32 0, %v546
        %v548 = vrot.slane %v365, %v547
        %v549 = vlaneseq
        %v550 = vshrl.u32 %v549, 7
        %v551 = vsub.s32 0, %v550
        %v552 = vrot.slane %v366, %v551
        %v553 = vadd.f32 %v519, %v544
        %v554 = vadd.f32 %v523, %v544
        %v555 = vadd.f32 %v527, %v548
        %v556 = vadd.f32 %v531, %v548
        %v557 = vadd.f32 %v535, %v552
        %v558 = vadd.f32 %v539, %v552
        %vm559 = vcmp.lt.f32.partialorder %v553, %v511
        %vm560 = vcmp.lt.f32.partialorder %v554, %v512
        %vm561 = vcmp.lt.f32.partialorder %v555, %v513
        %vm562 = vcmp.lt.f32.partialorder %v556, %v514
        %vm563 = vcmp.lt.f32.partialorder %v557, %v515
        %vm564 = vcmp.lt.f32.partialorder %v558, %v516
        %v565 = vsel %vm559, 1, 0
        %v566 = vsel %vm560, 1, 0
        %v567 = vsel %vm561, 1, 0
        %v568 = vsel %vm562, 1, 0
        %v569 = vsel %vm563, 1, 0
        %v570 = vsel %vm564, 1, 0
        %v571 = vcvt.s32.f32 %v565
        %v572 = vcvt.s32.f32 %v566
        %v573 = vcvt.s32.f32 %v567
        %v574 = vcvt.s32.f32 %v568
        %v575 = vcvt.s32.f32 %v569
        %v576 = vcvt.s32.f32 %v570
        %vm577 = vcmask 171008
        %v578 = vsel %vm577, %v571, 0.0
        %579 = vadd.xlane.f32.xlu0 %v578
        %v580 = vpop.xlane.xlu0 %579
        %vm581 = vcmask 165888
        %v582 = vsel %vm581, %v572, 0.0
        %583 = vadd.xlane.f32.xlu0 %v582
        %v584 = vpop.xlane.xlu0 %583
        %v585 = vsel %vm577, %v573, 0.0
        %586 = vadd.xlane.f32.xlu0 %v585
        %v587 = vpop.xlane.xlu0 %586
        %v588 = vsel %vm581, %v574, 0.0
        %589 = vadd.xlane.f32.xlu0 %v588
        %v590 = vpop.xlane.xlu0 %589
        %v591 = vsel %vm577, %v575, 0.0
        %592 = vadd.xlane.f32.xlu0 %v591
        %v593 = vpop.xlane.xlu0 %592
        %v594 = vsel %vm581, %v576, 0.0
        %595 = vadd.xlane.f32.xlu0 %v594
        %v596 = vpop.xlane.xlu0 %595
        %v597 = vadd.f32 %v578, %v582
        %v598 = vrot.slane %v597, 4
        %v599 = vadd.f32 %v597, %v598
        %v600 = vrot.slane %v599, 2
        %v601 = vadd.f32 %v599, %v600
        %v602 = vrot.slane %v601, 1
        %v603 = vadd.f32 %v601, %v602
        %v604 = vadd.f32 %v585, %v588
        %v605 = vrot.slane %v604, 4
        %v606 = vadd.f32 %v604, %v605
        %v607 = vrot.slane %v606, 2
        %v608 = vadd.f32 %v606, %v607
        %v609 = vrot.slane %v608, 1
        %v610 = vadd.f32 %v608, %v609
        %v611 = vadd.f32 %v591, %v594
        %v612 = vrot.slane %v611, 4
        %v613 = vadd.f32 %v611, %v612
        %v614 = vrot.slane %v613, 2
        %v615 = vadd.f32 %v613, %v614
        %v616 = vrot.slane %v615, 1
        %v617 = vadd.f32 %v615, %v616
        %vm618 = vcmp.eq.f32.partialorder %v580, 0.0
        %vm619 = vcmp.eq.f32.partialorder %v584, 0.0
        %vm620 = vcmp.eq.f32.partialorder %v587, 0.0
        %vm621 = vcmp.eq.f32.partialorder %v590, 0.0
        %vm622 = vcmp.eq.f32.partialorder %v593, 0.0
        %vm623 = vcmp.eq.f32.partialorder %v596, 0.0
        %v624 = vsel %vm618, %v367, 0.0
        %v625 = vsel %vm619, %v368, 0.0
        %v626 = vsel %vm620, %v369, 0.0
        %v627 = vsel %vm621, %v370, 0.0
        %v628 = vsel %vm622, %v371, 0.0
        %v629 = vsel %vm623, %v372, 0.0
        %vm630 = vcmp.eq.f32.partialorder %v603, 0.0
        %vm631 = vcmp.eq.f32.partialorder %v610, 0.0
        %vm632 = vcmp.eq.f32.partialorder %v617, 0.0
        %v633 = vsel %vm630, %v283, 0.0
        %v634 = vsel %vm631, %v284, 0.0
        %v635 = vsel %vm632, %v285, 0.0
        %v636 = vld [vmem:[%s260] sm:$0xff]
        %v637 = vld [vmem:[%s260 + $0x8] sm:$0x7]
        %v638 = vld [vmem:[%s260 + $0x10] sm:$0xff]
        %v639 = vld [vmem:[%s260 + $0x18] sm:$0x7]
        %v640 = vld [vmem:[%s260 + $0x20] sm:$0xff]
        %v641 = vld [vmem:[%s260 + $0x28] sm:$0x7]
        %v642 = vmul.f32 %v636, %v571
        %v643 = vmul.f32 %v637, %v572
        %v644 = vmul.f32 %v638, %v573
        %v645 = vmul.f32 %v639, %v574
        %v646 = vmul.f32 %v640, %v575
        %v647 = vmul.f32 %v641, %v576
        %v648 = vsel %vm577, %v642, 0.0
        %v649 = vsel %vm581, %v643, 0.0
        %v650 = vadd.f32 %v648, %v649
        %v651 = vsel %vm577, %v644, 0.0
        %v652 = vadd.f32 %v650, %v651
        %v653 = vsel %vm581, %v645, 0.0
        %v654 = vadd.f32 %v652, %v653
        %v655 = vsel %vm577, %v646, 0.0
        %v656 = vadd.f32 %v654, %v655
        %v657 = vsel %vm581, %v647, 0.0
        %v658 = vadd.f32 %v656, %v657
        %659 = vadd.xlane.f32.xlu0 %v658
        %v660 = vpop.xlane.xlu0 %659
        %v661 = vrot.slane %v660, 4
        %v662 = vadd.f32 %v660, %v661
        %v663 = vrot.slane %v662, 2
        %v664 = vadd.f32 %v662, %v663
        %v665 = vrot.slane %v664, 1
        %v666 = vadd.f32 %v664, %v665
        %s667 = vtos %v666
        %674 = vrot.lane.b32.xlu0 %v624, 16
        %v675 = vpop.permute.xlu0 %674
        %676 = vrot.lane.b32.xlu0 %v625, 16
        %v677 = vpop.permute.xlu0 %676
        %678 = vrot.lane.b32.xlu0 %v626, 16
        %v679 = vpop.permute.xlu0 %678
        %680 = vrot.lane.b32.xlu0 %v627, 16
        %v681 = vpop.permute.xlu0 %680
        %682 = vrot.lane.b32.xlu0 %v628, 16
        %v683 = vpop.permute.xlu0 %682
        %684 = vrot.lane.b32.xlu0 %v629, 16
        %v685 = vpop.permute.xlu0 %684
        %v692 = vmul.f32 %v636, %v675
        %v693 = vmul.f32 %v637, %v677
        %v694 = vmul.f32 %v638, %v679
        %v695 = vmul.f32 %v639, %v681
        %v696 = vmul.f32 %v640, %v683
        %v697 = vmul.f32 %v641, %v685
        %704 = vrot.lane.b32.xlu0 %v692, 108
        %v705 = vpop.permute.xlu0 %704
        %706 = vrot.lane.b32.xlu0 %v693, 108
        %v707 = vpop.permute.xlu0 %706
        %708 = vrot.lane.b32.xlu0 %v694, 108
        %v709 = vpop.permute.xlu0 %708
        %710 = vrot.lane.b32.xlu0 %v695, 108
        %v711 = vpop.permute.xlu0 %710
        %712 = vrot.lane.b32.xlu0 %v696, 108
        %v713 = vpop.permute.xlu0 %712
        %714 = vrot.lane.b32.xlu0 %v697, 108
        %v715 = vpop.permute.xlu0 %714
        %vm722 = vcmask 7168
        %v723 = vsel %vm722, %v705, 0.0
        %vm724 = vcmask 2048
        %v725 = vsel %vm724, %v707, 0.0
        %v726 = vadd.f32 %v723, %v725
        %v727 = vsel %vm722, %v709, 0.0
        %v728 = vadd.f32 %v726, %v727
        %v729 = vsel %vm724, %v711, 0.0
        %v730 = vadd.f32 %v728, %v729
        %v731 = vsel %vm722, %v713, 0.0
        %v732 = vadd.f32 %v730, %v731
        %v733 = vsel %vm724, %v715, 0.0
        %v734 = vadd.f32 %v732, %v733
        %735 = vadd.xlane.f32.xlu0 %v734
        %v736 = vpop.xlane.xlu0 %735
        %v737 = vrot.slane %v736, 4
        %v738 = vadd.f32 %v736, %v737
        %v739 = vrot.slane %v738, 2
        %v740 = vadd.f32 %v738, %v739
        %v741 = vrot.slane %v740, 1
        %v742 = vadd.f32 %v740, %v741
        %s743 = vtos %v742
        %s744 = sadd.f32 %s667, %s743
        %v745 = vld [vmem:[%s260 + $0xa] sm:$0x1]
        %v746 = vld [vmem:[%s260 + $0x1a] sm:$0x1]
        %v747 = vld [vmem:[%s260 + $0x2a] sm:$0x1]
        %v748 = vmul.f32 %v745, %v633
        %v749 = vmul.f32 %v746, %v634
        %v750 = vmul.f32 %v747, %v635
        %vm751 = vcmask 163840
        %v752 = vsel %vm751, %v748, 0.0
        %v753 = vsel %vm751, %v749, 0.0
        %v754 = vadd.f32 %v752, %v753
        %v755 = vsel %vm751, %v750, 0.0
        %v756 = vadd.f32 %v754, %v755
        %757 = vadd.xlane.f32.xlu0 %v756
        %v758 = vpop.xlane.xlu0 %757
        %v759 = vrot.slane %v758, 4
        %v760 = vadd.f32 %v758, %v759
        %v761 = vrot.slane %v760, 2
        %v762 = vadd.f32 %v760, %v761
        %v763 = vrot.slane %v762, 1
        %v764 = vadd.f32 %v762, %v763
        %s765 = vtos %v764
        %s766 = sadd.f32 %s744, %s765
        %v767 = vsel %vm722, %v580, 0.0
        %v768 = vsel %vm724, %v584, 0.0
        %v769 = vadd.f32 %v767, %v768
        %v770 = vsel %vm722, %v587, 0.0
        %v771 = vadd.f32 %v769, %v770
        %v772 = vsel %vm724, %v590, 0.0
        %v773 = vadd.f32 %v771, %v772
        %v774 = vsel %vm722, %v593, 0.0
        %v775 = vadd.f32 %v773, %v774
        %v776 = vsel %vm724, %v596, 0.0
        %v777 = vadd.f32 %v775, %v776
        %778 = vadd.xlane.f32.xlu0 %v777
        %v779 = vpop.xlane.xlu0 %778
        %v780 = vrot.slane %v779, 4
        %v781 = vadd.f32 %v779, %v780
        %v782 = vrot.slane %v781, 2
        %v783 = vadd.f32 %v781, %v782
        %v784 = vrot.slane %v783, 1
        %v785 = vadd.f32 %v783, %v784
        %s786 = vtos %v785
        %787 = vrot.lane.b32.xlu0 %v624, 124
        %v788 = vpop.permute.xlu0 %787
        %789 = vrot.lane.b32.xlu0 %v625, 124
        %v790 = vpop.permute.xlu0 %789
        %791 = vrot.lane.b32.xlu0 %v626, 124
        %v792 = vpop.permute.xlu0 %791
        %793 = vrot.lane.b32.xlu0 %v627, 124
        %v794 = vpop.permute.xlu0 %793
        %795 = vrot.lane.b32.xlu0 %v628, 124
        %v796 = vpop.permute.xlu0 %795
        %797 = vrot.lane.b32.xlu0 %v629, 124
        %v798 = vpop.permute.xlu0 %797
        %v805 = vsel %vm722, %v788, 0.0
        %v806 = vsel %vm724, %v790, 0.0
        %v807 = vadd.f32 %v805, %v806
        %v808 = vsel %vm722, %v792, 0.0
        %v809 = vadd.f32 %v807, %v808
        %v810 = vsel %vm724, %v794, 0.0
        %v811 = vadd.f32 %v809, %v810
        %v812 = vsel %vm722, %v796, 0.0
        %v813 = vadd.f32 %v811, %v812
        %v814 = vsel %vm724, %v798, 0.0
        %v815 = vadd.f32 %v813, %v814
        %816 = vadd.xlane.f32.xlu0 %v815
        %v817 = vpop.xlane.xlu0 %816
        %v818 = vrot.slane %v817, 4
        %v819 = vadd.f32 %v817, %v818
        %v820 = vrot.slane %v819, 2
        %v821 = vadd.f32 %v819, %v820
        %v822 = vrot.slane %v821, 1
        %v823 = vadd.f32 %v821, %v822
        %s824 = vtos %v823
        %s825 = sadd.f32 %s786, %s824
        %v826 = vsel %vm751, %v633, 0.0
        %v827 = vsel %vm751, %v634, 0.0
        %v828 = vadd.f32 %v826, %v827
        %v829 = vsel %vm751, %v635, 0.0
        %v830 = vadd.f32 %v828, %v829
        %831 = vadd.xlane.f32.xlu0 %v830
        %v832 = vpop.xlane.xlu0 %831
        %v833 = vrot.slane %v832, 4
        %v834 = vadd.f32 %v832, %v833
        %v835 = vrot.slane %v834, 2
        %v836 = vadd.f32 %v834, %v835
        %v837 = vrot.slane %v836, 1
        %v838 = vadd.f32 %v836, %v837
        %s839 = vtos %v838
        %s840 = sadd.f32 %s825, %s839
        %v841 = vlaneseq
        %v842 = vand.u32 %v841, 127
        %v843 = vlaneseq
        %v844 = vshrl.u32 %v843, 7
        %vm845 = vcmp.eq.s32.totalorder %v844, 0
        %vm846 = vcmp.eq.s32.totalorder %v842, 0
        %vm847 = vmand %vm845, %vm846
        %vm848 = vcmp.eq.s32.totalorder %v842, 1
        %vm849 = vmand %vm845, %vm848
        %v850 = vstv %s840
        %v851 = vsel %vm849, %v850, 0.0
        %v852 = vstv %s766
        %v853 = vsel %vm847, %v852, %v851
        %854 = vst [vmem:[%s241] sm:$0xff] %v853
        %s855 = sand.u32 %s126, 1
        %s856 = scalar_lea.sflag [#allocation3], %s855
        %s857 = sand.u32 %s126, 1
        %s858 = smul.addr %s857, 8
        %s859 = scalar_lea.vmem [#allocation5], %s858
        // Predicated region
        $region41: #{tpu_custom_call.1} parent=35 // pred_check
          %p860 = pneg %p136
        $region42: #{tpu_custom_call.1} parent=35 // pred_check_branch
          %862 = sbr.rel (%p860) target = $region44
        $region43: #{tpu_custom_call.1} parent=35 // pred_region
          %s864 = ssub.s32 128, 128
          %865 = vsyncadd %s856, %s864
          %s866 = smul.addr %s19, 128
          %s867 = scalar_lea.hbm %s4, %s866
          %s869 = sshll.u32 %s859, 4
          %s870 = int_to_ptr.vmem [resolvable:$true] %s869
          %872 = dma.vmem_to_hbm [thread:$0]  %s870, 128, %s867, %s856
        $region44: #{tpu_custom_call.1} parent=35 // pred_fallthru
          _
      $region36: #{tpu_custom_call.1} parent=5 // pred_fallthru
        _
      %p873 = scmp.le.s32.totalorder 2, %s14
      // Predicated region
      $region45: #{tpu_custom_call.1} parent=5 // pred_check
        %p874 = pneg %p873
      $region46: #{tpu_custom_call.1} parent=5 // pred_check_branch
        %876 = sbr.rel (%p874) target = $region48
      $region47: #{tpu_custom_call.1} parent=5 // pred_region
        %s877 = ssub.s32 %s14, 2
        // Predicated region
        $region49: #{tpu_custom_call.1} parent=47 // pred_check
          %p878 = pneg %p142
        $region50: #{tpu_custom_call.1} parent=47 // pred_check_branch
          %880 = sbr.rel (%p878) target = $region52
        $region51: #{tpu_custom_call.1} parent=47 // pred_region
          %s881 = sand.u32 %s127, 1
          %s882 = scalar_lea.sflag [#allocation3], %s881
          %s883 = sand.u32 %s127, 1
          %s884 = smul.addr %s883, 8
          %s885 = scalar_lea.vmem [#allocation5], %s884
          %886 = dma.done %s882, 128
        $region52: #{tpu_custom_call.1} parent=47 // pred_fallthru
          _
      $region48: #{tpu_custom_call.1} parent=5 // pred_fallthru
        _
    $region6: #{tpu_custom_call.1} parent=1 // loop_footer
      %s18 = sadd.s32 1, %s14
    $region7: #{tpu_custom_call.1} parent=1 // loop_footer_branch
      %13 = sbr.rel target = $region3
    $region8: #{tpu_custom_call.1} parent=1 // loop_exit
      _
    %887 = vsyncpa [#allocation3], 1
    %s888 = scalar_lea.sflag [#allocation3], 1
    %889 = vsyncpa %s888, 1
    %890 = vsyncpa [#allocation4], 1
    %s891 = scalar_lea.sflag [#allocation4], 1
    %892 = vsyncpa %s891, 1

</llo_original>
